<compile_context>
chip_gen: v7x
topology: tpu7x:2x2x1
jax: 0.10.0
libtpu: 0.0.40
codegen_flags: <defaults>
</compile_context>

<pallas_src>
import functools

import jax
import jax.numpy as jnp
from jax import lax
from jax.experimental import pallas as pl
from jax.experimental.pallas import tpu as pltpu


def _choose_block_t(T, B, C, itemsize, budget_bytes=16 << 20):
    """Largest divisor of T whose double-buffered input block fits the budget.

    Budget is kept well under v7x's 32 MiB default scoped VMEM (64 MiB phys).
    """
    per_t = max(1, B * C * itemsize)
    max_t = max(1, budget_bytes // (2 * per_t))      # x2: input double-buffer
    bt = min(T, max_t)
    while T % bt:
        bt -= 1
    return bt


# ----------------------------------------------------------------------------
# Kernel 1 (TET=True): fused  sum_t mean_b CE(logits[t], target)  and
#                              sum_{t,b,c} (logits - phi)^2
# in a single streaming pass.  grid=(T//Tt,), block (Tt, B, C).
# ----------------------------------------------------------------------------
def _tet_fused_kernel(target_ref, logits_ref, ce_ref, sq_ref, ce_acc, sq_acc,
                      *, phi):
    tb = pl.program_id(0)
    nb = pl.num_programs(0)

    @pl.when(tb == 0)
    def _():
        ce_acc[...] = jnp.zeros_like(ce_acc)
        sq_acc[...] = jnp.zeros_like(sq_acc)

    x = logits_ref[...].astype(jnp.float32)                       # (Tt, B, C)

    # --- cross-entropy (stable logsumexp) -----------------------------------
    m = jnp.max(x, axis=-1, keepdims=True)                        # (Tt, B, 1)
    lse = jnp.log(jnp.sum(jnp.exp(x - m), axis=-1, keepdims=True)) + m
    cls = lax.broadcasted_iota(jnp.int32, x.shape[1:], 1)         # (B, C)
    mask = cls == target_ref[...]                                 # (B, C) bool
    correct = jnp.sum(jnp.where(mask[None, :, :], x, 0.0),
                      axis=-1, keepdims=True)                     # (Tt, B, 1)
    ce_acc[...] += jnp.sum(lse - correct, axis=0)                 # (B, 1)

    # --- MSE regularizer on the already-loaded tile -------------------------
    d = x - phi
    sq_acc[...] += jnp.sum(d * d, axis=0)                         # (B, C)

    @pl.when(tb == nb - 1)
    def _():
        inv_b = 1.0 / ce_acc.shape[0]
        ce_ref[...] = jnp.sum(ce_acc[...], keepdims=True) * inv_b  # (1, 1)
        sq_ref[...] = jnp.sum(sq_acc[...], keepdims=True)          # (1, 1)


def tet_loss_sums(logits, target, phi):
    """Returns (sum_t mean_b CE(logits[t], target), sum (logits - phi)^2)."""
    T, B, C = logits.shape
    block_t = _choose_block_t(T, B, C, jnp.dtype(logits.dtype).itemsize)
    tgt2d = target.astype(jnp.int32).reshape(B, 1)
    ce_sum, sq_sum = pl.pallas_call(
        functools.partial(_tet_fused_kernel, phi=float(phi)),
        out_shape=(jax.ShapeDtypeStruct((1, 1), jnp.float32),
                   jax.ShapeDtypeStruct((1, 1), jnp.float32)),
        grid=(T // block_t,),
        in_specs=[
            pl.BlockSpec((B, 1), lambda tb: (0, 0)),              # target ids
            pl.BlockSpec((block_t, B, C), lambda tb: (tb, 0, 0)),  # logits
        ],
        out_specs=(pl.BlockSpec((1, 1), lambda tb: (0, 0)),
                   pl.BlockSpec((1, 1), lambda tb: (0, 0))),
        scratch_shapes=[pltpu.VMEM((B, 1), jnp.float32),
                        pltpu.VMEM((B, C), jnp.float32)],
        compiler_params=pltpu.CompilerParams(
            dimension_semantics=("arbitrary",)),
    )(tgt2d, logits)
    return ce_sum[0, 0], sq_sum[0, 0]


# ----------------------------------------------------------------------------
# Kernel 2 (TET=False): fused  CE(mean_t logits, target).
# Time-sum accumulated in a (B, C) scratch; CE computed on the last step.
# ----------------------------------------------------------------------------
def _mean_ce_kernel(target_ref, logits_ref, out_ref, sum_acc, *, inv_t):
    tb = pl.program_id(0)

    @pl.when(tb == 0)
    def _():
        sum_acc[...] = jnp.zeros_like(sum_acc)

    x = logits_ref[...].astype(jnp.float32)                       # (Tt, B, C)
    sum_acc[...] += jnp.sum(x, axis=0)                            # (B, C)

    @pl.when(tb == pl.num_programs(0) - 1)
    def _():
        avg = sum_acc[...] * inv_t                                # (B, C)
        m = jnp.max(avg, axis=-1, keepdims=True)                  # (B, 1)
        lse = jnp.log(jnp.sum(jnp.exp(avg - m), axis=-1, keepdims=True)) + m
        cls = lax.broadcasted_iota(jnp.int32, avg.shape, 1)       # (B, C)
        correct = jnp.sum(jnp.where(cls == target_ref[...], avg, 0.0),
                          axis=-1, keepdims=True)                 # (B, 1)
        out_ref[...] = jnp.mean(lse - correct, keepdims=True)     # (1, 1)


def mean_ce_loss(logits, target):
    """Returns mean_b CE(mean_t logits, target)."""
    T, B, C = logits.shape
    block_t = _choose_block_t(T, B, C, jnp.dtype(logits.dtype).itemsize)
    tgt2d = target.astype(jnp.int32).reshape(B, 1)
    out = pl.pallas_call(
        functools.partial(_mean_ce_kernel, inv_t=1.0 / T),
        out_shape=jax.ShapeDtypeStruct((1, 1), jnp.float32),
        grid=(T // block_t,),
        in_specs=[
            pl.BlockSpec((B, 1), lambda tb: (0, 0)),
            pl.BlockSpec((block_t, B, C), lambda tb: (tb, 0, 0)),
        ],
        out_specs=pl.BlockSpec((1, 1), lambda tb: (0, 0)),
        scratch_shapes=[pltpu.VMEM((B, C), jnp.float32)],
        compiler_params=pltpu.CompilerParams(
            dimension_semantics=("arbitrary",)),
    )(tgt2d, logits)
    return out[0, 0]


# ----------------------------------------------------------------------------
# Module wrapper (mirrors the PyTorch CriterionWarpper; criterion = CE).
# ----------------------------------------------------------------------------
class CriterionWarpper:
    def __init__(self, TET=False, TET_phi=1.0, TET_lambda=0.0):
        self.TET = TET
        self.TET_phi = TET_phi
        self.TET_lambda = TET_lambda

    def __call__(self, output, target):
        # output: [T, B, C] float logits (any float dtype); target: [B] ints.
        T = output.shape[0]
        if self.TET:
            ce_sum, sq_sum = tet_loss_sums(output, target, self.TET_phi)
            loss = (1.0 - self.TET_lambda) * ce_sum / T
            if self.TET_lambda != 0:
                loss = loss + self.TET_lambda * (sq_sum / output.size)
            return loss
        else:
            return mean_ce_loss(output, target)


# ----------------------------------------------------------------------------
# Pure-JAX reference (for correctness check).
# ----------------------------------------------------------------------------
def _reference_loss(output, target, TET, phi, lam):
    output = output.astype(jnp.float32)

    def ce(logits):
        logp = jax.nn.log_softmax(logits, axis=-1)
        picked = jnp.take_along_axis(logp, target[:, None], axis=-1)
        return -jnp.mean(picked)

    if TET:
        per_t = jnp.stack([(1.0 - lam) * ce(output[t])
                           for t in range(output.shape[0])])
        loss = jnp.mean(per_t)
        if lam != 0:
            loss = loss + lam * jnp.mean((output - phi) ** 2)
        return loss
    return ce(jnp.mean(output, axis=0))


if __name__ == "__main__":
    T, B, C = 4, 8, 16
    key = jax.random.PRNGKey(0)
    k_logits, k_target = jax.random.split(key)
    output = jax.random.normal(k_logits, (T, B, C), dtype=jnp.float32)
    target = jax.random.randint(k_target, (B,), 0, C, dtype=jnp.int32)

    # TET mode with MSE regularizer (fused CE + MSE single pass).
    crit_tet = CriterionWarpper(TET=True, TET_phi=1.0, TET_lambda=0.05)
    loss_tet = jax.block_until_ready(crit_tet(output, target))
    ref_tet = _reference_loss(output, target, True, 1.0, 0.05)
    assert jnp.allclose(loss_tet, ref_tet, rtol=1e-4, atol=1e-5), (loss_tet, ref_tet)

    # TET mode without regularizer.
    crit_tet0 = CriterionWarpper(TET=True, TET_phi=1.0, TET_lambda=0.0)
    loss_tet0 = jax.block_until_ready(crit_tet0(output, target))
    ref_tet0 = _reference_loss(output, target, True, 1.0, 0.0)
    assert jnp.allclose(loss_tet0, ref_tet0, rtol=1e-4, atol=1e-5), (loss_tet0, ref_tet0)

    # Plain mode (criterion on time-averaged logits), fused in-kernel.
    crit_plain = CriterionWarpper(TET=False)
    loss_plain = jax.block_until_ready(crit_plain(output, target))
    ref_plain = _reference_loss(output, target, False, 1.0, 0.0)
    assert jnp.allclose(loss_plain, ref_plain, rtol=1e-4, atol=1e-5), (loss_plain, ref_plain)

    # bf16 activations go straight into the kernel (no HBM widening).
    out_bf16 = output.astype(jnp.bfloat16)
    loss_bf16 = jax.block_until_ready(crit_tet(out_bf16, target))
    ref_bf16 = _reference_loss(out_bf16, target, True, 1.0, 0.05)
    assert jnp.allclose(loss_bf16, ref_bf16, rtol=1e-3, atol=1e-4), (loss_bf16, ref_bf16)

    # TODO(synk): for C << 128 the class axis wastes vector lanes; a lane-dense
    # repack would need a relayout and isn't worth it for this mem-bound loss.
    print("KERNEL_OK")
</pallas_src>

<mosaic_0001>
module attributes {stable_mosaic.version = 11 : i64} {
  func.func @_tet_fused_kernel(%arg0: i32, %arg1: memref<8x1xi32, #tpu.memory_space<vmem>>, %arg2: memref<4x8x16xf32, #tpu.memory_space<vmem>>, %arg3: memref<1x1xf32, #tpu.memory_space<vmem>>, %arg4: memref<1x1xf32, #tpu.memory_space<vmem>>, %arg5: memref<8x1xf32, #tpu.memory_space<vmem>>, %arg6: memref<8x16xf32, #tpu.memory_space<vmem>>) attributes {dimension_semantics = [#tpu.dimension_semantics<arbitrary>], iteration_bounds = array<i64: 1>, scalar_prefetch = 0 : i64, scratch_operands = 2 : i64, tpu.core_type = #tpu.core_type<tc>, window_params = [{pipeline_mode = #tpu.pipeline_mode<synchronous>, transform_indices = @transform_0, window_bounds = array<i64: 8, 1>}, {transform_indices = @transform_1, window_bounds = array<i64: 4, 8, 16>}, {pipeline_mode = #tpu.pipeline_mode<synchronous>, transform_indices = @transform_2, window_bounds = array<i64: 1, 1>}, {pipeline_mode = #tpu.pipeline_mode<synchronous>, transform_indices = @transform_3, window_bounds = array<i64: 1, 1>}]} {
    %c0_i32 = arith.constant 0 : i32
    %0 = arith.cmpi eq, %arg0, %c0_i32 : i32
    %1 = arith.extui %0 : i1 to i32
    %c0_i32_0 = arith.constant 0 : i32
    %2 = arith.cmpi ne, %1, %c0_i32_0 : i32
    scf.if %2 {
      %cst_21 = arith.constant 0.000000e+00 : f32
      %39 = vector.broadcast %cst_21 : f32 to vector<8x1xf32>
      %c0_22 = arith.constant 0 : index
      %c0_23 = arith.constant 0 : index
      %40 = vector.load %arg5[%c0_22, %c0_23] : memref<8x1xf32, #tpu.memory_space<vmem>>, vector<8x1xf32>
      tpu.vector_store %arg5[%c0_22, %c0_23], %39 {strides = array<i32>} : memref<8x1xf32, #tpu.memory_space<vmem>>, vector<8x1xf32>,
      %cst_24 = arith.constant 0.000000e+00 : f32
      %41 = vector.broadcast %cst_24 : f32 to vector<8x16xf32>
      %c0_25 = arith.constant 0 : index
      %c0_26 = arith.constant 0 : index
      %42 = vector.load %arg6[%c0_25, %c0_26] : memref<8x16xf32, #tpu.memory_space<vmem>>, vector<8x16xf32>
      tpu.vector_store %arg6[%c0_25, %c0_26], %41 {strides = array<i32>} : memref<8x16xf32, #tpu.memory_space<vmem>>, vector<8x16xf32>,
    } else {
    }
    %c0 = arith.constant 0 : index
    %c0_1 = arith.constant 0 : index
    %c0_2 = arith.constant 0 : index
    %3 = vector.load %arg2[%c0, %c0_1, %c0_2] : memref<4x8x16xf32, #tpu.memory_space<vmem>>, vector<4x8x16xf32>
    %cst = arith.constant dense<0xFF800000> : vector<4x8xf32>
    %4 = vector.multi_reduction <maximumf>, %3, %cst [2] : vector<4x8x16xf32> to vector<4x8xf32>
    %5 = vector.shape_cast %4 : vector<4x8xf32> to vector<4x8x1xf32>
    %6 = vector.broadcast %5 : vector<4x8x1xf32> to vector<4x8x16xf32>
    %7 = arith.subf %3, %6 : vector<4x8x16xf32>
    %8 = math.exp %7 : vector<4x8x16xf32>
    %cst_3 = arith.constant dense<0.000000e+00> : vector<4x8xf32>
    %9 = vector.multi_reduction <add>, %8, %cst_3 [2] : vector<4x8x16xf32> to vector<4x8xf32>
    %10 = vector.shape_cast %9 : vector<4x8xf32> to vector<4x8x1xf32>
    %11 = math.log %10 : vector<4x8x1xf32>
    %12 = arith.addf %11, %5 : vector<4x8x1xf32>
    %13 = tpu.iota {dimensions = array<i32: 1>} : vector<8x16xi32>
    %c0_4 = arith.constant 0 : index
    %c0_5 = arith.constant 0 : index
    %14 = vector.load %arg1[%c0_4, %c0_5] : memref<8x1xi32, #tpu.memory_space<vmem>>, vector<8x1xi32>
    %15 = vector.broadcast %14 : vector<8x1xi32> to vector<8x16xi32>
    %16 = arith.cmpi eq, %13, %15 : vector<8x16xi32>
    %17 = vector.shape_cast %16 : vector<8x16xi1> to vector<1x8x16xi1>
    %cst_6 = arith.constant 0.000000e+00 : f32
    %18 = vector.shape_cast %17 : vector<1x8x16xi1> to vector<1x8x16xi1>
    %19 = vector.broadcast %18 : vector<1x8x16xi1> to vector<4x8x16xi1>
    %20 = vector.broadcast %cst_6 : f32 to vector<4x8x16xf32>
    %21 = arith.select %19, %3, %20 : vector<4x8x16xi1>, vector<4x8x16xf32>
    %cst_7 = arith.constant dense<0.000000e+00> : vector<4x8xf32>
    %22 = vector.multi_reduction <add>, %21, %cst_7 [2] : vector<4x8x16xf32> to vector<4x8xf32>
    %23 = vector.shape_cast %22 : vector<4x8xf32> to vector<4x8x1xf32>
    %c0_8 = arith.constant 0 : index
    %c0_9 = arith.constant 0 : index
    %24 = vector.load %arg5[%c0_8, %c0_9] : memref<8x1xf32, #tpu.memory_space<vmem>>, vector<8x1xf32>
    %25 = arith.subf %12, %23 : vector<4x8x1xf32>
    %cst_10 = arith.constant dense<0.000000e+00> : vector<8x1xf32>
    %26 = vector.multi_reduction <add>, %25, %cst_10 [0] : vector<4x8x1xf32> to vector<8x1xf32>
    %27 = arith.addf %24, %26 : vector<8x1xf32>
    %c0_11 = arith.constant 0 : index
    %c0_12 = arith.constant 0 : index
    %28 = vector.load %arg5[%c0_11, %c0_12] : memref<8x1xf32, #tpu.memory_space<vmem>>, vector<8x1xf32>
    tpu.vector_store %arg5[%c0_11, %c0_12], %27 {strides = array<i32>} : memref<8x1xf32, #tpu.memory_space<vmem>>, vector<8x1xf32>,
    %cst_13 = arith.constant 1.000000e+00 : f32
    %29 = vector.broadcast %cst_13 : f32 to vector<4x8x16xf32>
    %30 = arith.subf %3, %29 : vector<4x8x16xf32>
    %c0_14 = arith.constant 0 : index
    %c0_15 = arith.constant 0 : index
    %31 = vector.load %arg6[%c0_14, %c0_15] : memref<8x16xf32, #tpu.memory_space<vmem>>, vector<8x16xf32>
    %32 = arith.mulf %30, %30 : vector<4x8x16xf32>
    %cst_16 = arith.constant dense<0.000000e+00> : vector<8x16xf32>
    %33 = vector.multi_reduction <add>, %32, %cst_16 [0] : vector<4x8x16xf32> to vector<8x16xf32>
    %34 = arith.addf %31, %33 : vector<8x16xf32>
    %c0_17 = arith.constant 0 : index
    %c0_18 = arith.constant 0 : index
    %35 = vector.load %arg6[%c0_17, %c0_18] : memref<8x16xf32, #tpu.memory_space<vmem>>, vector<8x16xf32>
    tpu.vector_store %arg6[%c0_17, %c0_18], %34 {strides = array<i32>} : memref<8x16xf32, #tpu.memory_space<vmem>>, vector<8x16xf32>,
    %c0_i32_19 = arith.constant 0 : i32
    %36 = arith.cmpi eq, %arg0, %c0_i32_19 : i32
    %37 = arith.extui %36 : i1 to i32
    %c0_i32_20 = arith.constant 0 : i32
    %38 = arith.cmpi ne, %37, %c0_i32_20 : i32
    scf.if %38 {
      %c0_21 = arith.constant 0 : index
      %c0_22 = arith.constant 0 : index
      %39 = vector.load %arg5[%c0_21, %c0_22] : memref<8x1xf32, #tpu.memory_space<vmem>>, vector<8x1xf32>
      %40 = vector.shape_cast %39 : vector<8x1xf32> to vector<1x8x1xf32>
      %cst_23 = arith.constant dense<0.000000e+00> : vector<1xf32>
      %41 = vector.multi_reduction <add>, %40, %cst_23 [1, 2] : vector<1x8x1xf32> to vector<1xf32>
      %42 = vector.shape_cast %41 : vector<1xf32> to vector<1x1x1xf32>
      %43 = vector.extract %42[0, 0, 0] : f32 from vector<1x1x1xf32>
      %44 = vector.broadcast %43 : f32 to vector<1x1xf32>
      %cst_24 = arith.constant 1.250000e-01 : f32
      %45 = vector.broadcast %cst_24 : f32 to vector<1x1xf32>
      %46 = arith.mulf %44, %45 : vector<1x1xf32>
      %c0_25 = arith.constant 0 : index
      %c0_26 = arith.constant 0 : index
      %47 = vector.load %arg3[%c0_25, %c0_26] : memref<1x1xf32, #tpu.memory_space<vmem>>, vector<1x1xf32>
      tpu.vector_store %arg3[%c0_25, %c0_26], %46 {strides = array<i32>} : memref<1x1xf32, #tpu.memory_space<vmem>>, vector<1x1xf32>,
      %c0_27 = arith.constant 0 : index
      %c0_28 = arith.constant 0 : index
      %48 = vector.load %arg6[%c0_27, %c0_28] : memref<8x16xf32, #tpu.memory_space<vmem>>, vector<8x16xf32>
      %49 = vector.shape_cast %48 : vector<8x16xf32> to vector<1x8x16xf32>
      %cst_29 = arith.constant dense<0.000000e+00> : vector<1xf32>
      %50 = vector.multi_reduction <add>, %49, %cst_29 [1, 2] : vector<1x8x16xf32> to vector<1xf32>
      %51 = vector.shape_cast %50 : vector<1xf32> to vector<1x1x1xf32>
      %52 = vector.extract %51[0, 0, 0] : f32 from vector<1x1x1xf32>
      %53 = vector.broadcast %52 : f32 to vector<1x1xf32>
      %c0_30 = arith.constant 0 : index
      %c0_31 = arith.constant 0 : index
      %54 = vector.load %arg4[%c0_30, %c0_31] : memref<1x1xf32, #tpu.memory_space<vmem>>, vector<1x1xf32>
      tpu.vector_store %arg4[%c0_30, %c0_31], %53 {strides = array<i32>} : memref<1x1xf32, #tpu.memory_space<vmem>>, vector<1x1xf32>,
    } else {
    }
    return
  }
  func.func @transform_0(%arg0: i32) -> (i32, i32) {
    %c0_i32 = arith.constant 0 : i32
    %c0_i32_0 = arith.constant 0 : i32
    %c0_i32_1 = arith.constant 0 : i32
    return %c0_i32, %c0_i32_0 : i32, i32
  }
  func.func @transform_1(%arg0: i32) -> (i32, i32, i32) {
    %c0_i32 = arith.constant 0 : i32
    %c0_i32_0 = arith.constant 0 : i32
    %c0_i32_1 = arith.constant 0 : i32
    return %arg0, %c0_i32, %c0_i32_0 : i32, i32, i32
  }
  func.func @transform_2(%arg0: i32) -> (i32, i32) {
    %c0_i32 = arith.constant 0 : i32
    %c0_i32_0 = arith.constant 0 : i32
    %c0_i32_1 = arith.constant 0 : i32
    return %c0_i32, %c0_i32_0 : i32, i32
  }
  func.func @transform_3(%arg0: i32) -> (i32, i32) {
    %c0_i32 = arith.constant 0 : i32
    %c0_i32_0 = arith.constant 0 : i32
    %c0_i32_1 = arith.constant 0 : i32
    return %c0_i32, %c0_i32_0 : i32, i32
  }
}

</mosaic_0001>

<llo_original>
// kernel: tpu_custom_call.1
$region0: #{tpu_custom_call.1}
  #allocation0 [shape = 'u32[]', space=smem, size = 0x4, offset = 0x4, fixed_abs, tag = 'smem constant byte address 0x4 - core index']
  #allocation1 [shape = 'u32[144,128]{1,0:T(1,128)}', space=vmem, size = 0x12000, scoped, tag = 'internal scratch']
  #allocation2 [shape = 'f32[8,1]{1,0:T(8,128)}', space=vmem, size = 0x1000, scoped, tag = 'scratch operand']
  #allocation3 [shape = 'f32[8,16]{1,0:T(8,128)}', space=vmem, size = 0x1000, scoped, tag = 'scratch operand']
  %s0 = inlined_call_operand.vmem [shape: s32[8,1], index: 0, kind: input, shape index: {}]
  %s1 = inlined_call_operand.hbm [shape: f32[4,8,16], index: 1, kind: input, shape index: {}]
  %s2 = inlined_call_operand.hbm [shape: f32[1,1], index: 2, kind: output, shape index: {0}]
  %s3 = inlined_call_operand.hbm [shape: f32[1,1], index: 3, kind: output, shape index: {1}]
  %4 = xla_tuple %s2, %s3
  %s5 = sld [smem:[#allocation0]]
  $region38: #{tpu_custom_call.1} parent=0
    _
  %s7 = ssub.s32 1, %s5
  %s8 = scalar_select 0, %s7, %s5
  $region1: #{tpu_custom_call.1} parent=0
    #allocation4 [shape = 'u8[16384]{0}', space=vmem, size = 0x4000, scoped, tag = 'input window, operand 1, single buffered']
    #allocation5 [shape = 's32[1]{0}', space=sflag, size = 0x4, scoped, tag = 'scoped memory for tpu_custom_call.1']
    #allocation6 [shape = 's32[1]{0}', space=sflag, size = 0x4, scoped, tag = 'scoped memory for tpu_custom_call.1']
    #allocation7 [shape = 'u8[512]{0}', space=vmem, size = 0x400, scoped, tag = 'output window, operand 0, single buffered']
    #allocation8 [shape = 'u8[512]{0}', space=vmem, size = 0x400, scoped, tag = 'output window, operand 1, single buffered']
    #allocation9 [shape = 's32[1]{0}', space=sflag, size = 0x4, scoped, tag = 'scoped memory for tpu_custom_call.1']
    %9 = vsyncpa [#allocation5], 0
    %10 = vsyncpa [#allocation6], 0
    %11 = vsyncpa [#allocation9], 0
    // Predicated region
    $region2: #{tpu_custom_call.1} parent=1 // pred_check
      _
    $region3: #{tpu_custom_call.1} parent=1 // pred_check_branch
      %13 = sbr.rel (0) target = $region5
    $region4: #{tpu_custom_call.1} parent=1 // pred_region
      _
    $region5: #{tpu_custom_call.1} parent=1 // pred_fallthru
      _
    // Predicated region
    $region6: #{tpu_custom_call.1} parent=1 // pred_check
      _
    $region7: #{tpu_custom_call.1} parent=1 // pred_check_branch
      %15 = sbr.rel (0) target = $region9
    $region8: #{tpu_custom_call.1} parent=1 // pred_region
      %s17 = ssub.s32 512, 512
      %18 = vsyncadd [#allocation5], %s17
      %s19 = sshll.u32 [#allocation4], 4
      %s20 = int_to_ptr.vmem [resolvable:$true] %s19
      %25 = dma.hbm_to_vmem [thread:$0]  %s1, 512, %s20, [#allocation5], 128, 128, 8
    $region9: #{tpu_custom_call.1} parent=1 // pred_fallthru
      _
    // Predicated region
    $region10: #{tpu_custom_call.1} parent=1 // pred_check
      _
    $region11: #{tpu_custom_call.1} parent=1 // pred_check_branch
      %27 = sbr.rel (0) target = $region13
    $region12: #{tpu_custom_call.1} parent=1 // pred_region
      %28 = dma.done [#allocation5], 512
    $region13: #{tpu_custom_call.1} parent=1 // pred_fallthru
      _
    %p29 = scmp.eq.s32.totalorder 0, 0
    // Predicated region
    $region14: #{tpu_custom_call.1} parent=1 // pred_check
      %p30 = pneg %p29
    $region15: #{tpu_custom_call.1} parent=1 // pred_check_branch
      %32 = sbr.rel (%p30) target = $region17
    $region16: #{tpu_custom_call.1} parent=1 // pred_region
      %vm33 = vcmask 7168
      %34 = vst.msk [vmem:[#allocation2] sm:$0xff] %vm33, 0.0
      %vm35 = vcmask 130048
      %36 = vst.msk [vmem:[#allocation3] sm:$0xff] %vm35, 0.0
    $region17: #{tpu_custom_call.1} parent=1 // pred_fallthru
      _
    %v37 = vld [vmem:[#allocation4] sm:$0xff]
    %v38 = vld [vmem:[#allocation4 + $0x8] sm:$0xff]
    %v39 = vld [vmem:[#allocation4 + $0x10] sm:$0xff]
    %v40 = vld [vmem:[#allocation4 + $0x18] sm:$0xff]
    %vm41 = vcmask 130048
    %v42 = vsel %vm41, %v37, -inf
    %43 = vmax.xlane.f32.xlu0 %v42
    %v44 = vpop.xlane.xlu0 %43
    %v45 = vsel %vm41, %v38, -inf
    %46 = vmax.xlane.f32.xlu0 %v45
    %v47 = vpop.xlane.xlu0 %46
    %v48 = vsel %vm41, %v39, -inf
    %49 = vmax.xlane.f32.xlu0 %v48
    %v50 = vpop.xlane.xlu0 %49
    %v51 = vsel %vm41, %v40, -inf
    %52 = vmax.xlane.f32.xlu0 %v51
    %v53 = vpop.xlane.xlu0 %52
    %v54 = vsub.f32 %v37, %v44
    %v55 = vsub.f32 %v38, %v47
    %v56 = vsub.f32 %v39, %v50
    %v57 = vsub.f32 %v40, %v53
    %v58 = vmul.f32 %v54, 1.442695
    %v59 = vpow.pop %v58
    %v60 = vmul.f32 %v55, 1.442695
    %v61 = vpow.pop %v60
    %v62 = vmul.f32 %v56, 1.442695
    %v63 = vpow.pop %v62
    %v64 = vmul.f32 %v57, 1.442695
    %v65 = vpow.pop %v64
    %v66 = vsel %vm41, %v59, 0.0
    %67 = vadd.xlane.f32.xlu0 %v66
    %v68 = vpop.xlane.xlu0 %67
    %v69 = vsel %vm41, %v61, 0.0
    %70 = vadd.xlane.f32.xlu0 %v69
    %v71 = vpop.xlane.xlu0 %70
    %v72 = vsel %vm41, %v63, 0.0
    %73 = vadd.xlane.f32.xlu0 %v72
    %v74 = vpop.xlane.xlu0 %73
    %v75 = vsel %vm41, %v65, 0.0
    %76 = vadd.xlane.f32.xlu0 %v75
    %v77 = vpop.xlane.xlu0 %76
    %v78 = vlog2.pop %v68
    %v79 = vmul.f32 %v78, 0.6931472
    %v80 = vlog2.pop %v71
    %v81 = vmul.f32 %v80, 0.6931472
    %v82 = vlog2.pop %v74
    %v83 = vmul.f32 %v82, 0.6931472
    %v84 = vlog2.pop %v77
    %v85 = vmul.f32 %v84, 0.6931472
    %v86 = vadd.f32 %v79, %v44
    %v87 = vadd.f32 %v81, %v47
    %v88 = vadd.f32 %v83, %v50
    %v89 = vadd.f32 %v85, %v53
    %v90 = vlaneseq
    %v91 = vand.u32 %v90, 127
    %v92 = vld [vmem:[%s0] sm:$0xff]
    %93 = vset.pattern.permute.xlu0 0
    %94 = vperm.xlu0 %93, %v92
    %v95 = vpop.permute.xlu0 %94
    %vm96 = vcmp.eq.s32.totalorder %v91, %v95
    %v97 = vsel %vm96, 1, 0
    %vm98 = vcmp.eq.s32.totalorder %v97, 1
    %v99 = vsel %vm98, %v37, 0.0
    %v100 = vsel %vm98, %v38, 0.0
    %v101 = vsel %vm98, %v39, 0.0
    %v102 = vsel %vm98, %v40, 0.0
    %v103 = vsel %vm41, %v99, 0.0
    %104 = vadd.xlane.f32.xlu0 %v103
    %v105 = vpop.xlane.xlu0 %104
    %v106 = vsel %vm41, %v100, 0.0
    %107 = vadd.xlane.f32.xlu0 %v106
    %v108 = vpop.xlane.xlu0 %107
    %v109 = vsel %vm41, %v101, 0.0
    %110 = vadd.xlane.f32.xlu0 %v109
    %v111 = vpop.xlane.xlu0 %110
    %v112 = vsel %vm41, %v102, 0.0
    %113 = vadd.xlane.f32.xlu0 %v112
    %v114 = vpop.xlane.xlu0 %113
    %v115 = vld [vmem:[#allocation2] sm:$0xff]
    %v116 = vsub.f32 %v86, %v105
    %v117 = vsub.f32 %v87, %v108
    %v118 = vsub.f32 %v88, %v111
    %v119 = vsub.f32 %v89, %v114
    %v120 = vadd.f32 %v116, %v117
    %v121 = vadd.f32 %v120, %v118
    %v122 = vadd.f32 %v121, %v119
    %v123 = vadd.f32 %v115, %v122
    %vm124 = vcmask 7168
    %125 = vst.msk [vmem:[#allocation2] sm:$0xff] %vm124, %v123
    %v126 = vsub.f32 %v37, 1.0
    %v127 = vsub.f32 %v38, 1.0
    %v128 = vsub.f32 %v39, 1.0
    %v129 = vsub.f32 %v40, 1.0
    %v130 = vld [vmem:[#allocation3] sm:$0xff]
    %v131 = vmul.f32 %v126, %v126
    %v132 = vmul.f32 %v127, %v127
    %v133 = vmul.f32 %v128, %v128
    %v134 = vmul.f32 %v129, %v129
    %v135 = vsel %vm41, %v131, 0.0
    %v136 = vsel %vm41, %v132, 0.0
    %v137 = vadd.f32 %v135, %v136
    %v138 = vsel %vm41, %v133, 0.0
    %v139 = vadd.f32 %v137, %v138
    %v140 = vsel %vm41, %v134, 0.0
    %v141 = vadd.f32 %v139, %v140
    %v142 = vadd.f32 %v130, %v141
    %143 = vst.msk [vmem:[#allocation3] sm:$0xff] %vm41, %v142
    // Predicated region
    $region18: #{tpu_custom_call.1} parent=1 // pred_check
      %p144 = pneg %p29
    $region19: #{tpu_custom_call.1} parent=1 // pred_check_branch
      %146 = sbr.rel (%p144) target = $region21
    $region20: #{tpu_custom_call.1} parent=1 // pred_region
      %v147 = vld [vmem:[#allocation2] sm:$0xff]
      %v148 = vsel %vm124, %v147, 0.0
      %149 = vadd.xlane.f32.xlu0 %v148
      %v150 = vpop.xlane.xlu0 %149
      %v151 = vrot.slane %v150, 4
      %v152 = vadd.f32 %v150, %v151
      %v153 = vrot.slane %v152, 2
      %v154 = vadd.f32 %v152, %v153
      %v155 = vrot.slane %v154, 1
      %v156 = vadd.f32 %v154, %v155
      %s157 = vtos %v156
      %v158 = vstv %s157
      %v159 = vmul.f32 %v158, 0.125
      %vm160 = vcmask 0
      %161 = vst.msk [vmem:[#allocation7] sm:$0x1] %vm160, %v159
      %v162 = vld [vmem:[#allocation3] sm:$0xff]
      %v163 = vsel %vm41, %v162, 0.0
      %164 = vadd.xlane.f32.xlu0 %v163
      %v165 = vpop.xlane.xlu0 %164
      %v166 = vrot.slane %v165, 4
      %v167 = vadd.f32 %v165, %v166
      %v168 = vrot.slane %v167, 2
      %v169 = vadd.f32 %v167, %v168
      %v170 = vrot.slane %v169, 1
      %v171 = vadd.f32 %v169, %v170
      %s172 = vtos %v171
      %v173 = vstv %s172
      %174 = vst.msk [vmem:[#allocation8] sm:$0x1] %vm160, %v173
    $region21: #{tpu_custom_call.1} parent=1 // pred_fallthru
      _
    // Predicated region
    $region22: #{tpu_custom_call.1} parent=1 // pred_check
      _
    $region23: #{tpu_custom_call.1} parent=1 // pred_check_branch
      %176 = sbr.rel (0) target = $region25
    $region24: #{tpu_custom_call.1} parent=1 // pred_region
      %s178 = ssub.s32 16, 16
      %179 = vsyncadd [#allocation6], %s178
      %s181 = sshll.u32 [#allocation7], 4
      %s182 = int_to_ptr.vmem [resolvable:$true] %s181
      %184 = dma.vmem_to_hbm [thread:$0]  %s182, 16, %s2, [#allocation6]
    $region25: #{tpu_custom_call.1} parent=1 // pred_fallthru
      _
    // Predicated region
    $region26: #{tpu_custom_call.1} parent=1 // pred_check
      _
    $region27: #{tpu_custom_call.1} parent=1 // pred_check_branch
      %186 = sbr.rel (0) target = $region29
    $region28: #{tpu_custom_call.1} parent=1 // pred_region
      %s188 = ssub.s32 16, 16
      %189 = vsyncadd [#allocation9], %s188
      %s191 = sshll.u32 [#allocation8], 4
      %s192 = int_to_ptr.vmem [resolvable:$true] %s191
      %194 = dma.vmem_to_hbm [thread:$0]  %s192, 16, %s3, [#allocation9]
    $region29: #{tpu_custom_call.1} parent=1 // pred_fallthru
      _
    // Predicated region
    $region30: #{tpu_custom_call.1} parent=1 // pred_check
      _
    $region31: #{tpu_custom_call.1} parent=1 // pred_check_branch
      %196 = sbr.rel (0) target = $region33
    $region32: #{tpu_custom_call.1} parent=1 // pred_region
      %197 = dma.done [#allocation6], 16
    $region33: #{tpu_custom_call.1} parent=1 // pred_fallthru
      _
    // Predicated region
    $region34: #{tpu_custom_call.1} parent=1 // pred_check
      _
    $region35: #{tpu_custom_call.1} parent=1 // pred_check_branch
      %199 = sbr.rel (0) target = $region37
    $region36: #{tpu_custom_call.1} parent=1 // pred_region
      %200 = dma.done [#allocation9], 16
    $region37: #{tpu_custom_call.1} parent=1 // pred_fallthru
      _
    %201 = vsyncpa [#allocation5], 1
    %202 = vsyncpa [#allocation6], 1
    %203 = vsyncpa [#allocation9], 1

</llo_original>
